<compile_context>
chip_gen: v7x
topology: tpu7x:2x2x1
jax: 0.10.0
libtpu: 0.0.40
codegen_flags: <defaults>
</compile_context>

<pallas_src>
import jax
import jax.numpy as jnp
from jax.experimental import pallas as pl
from jax.experimental.pallas import tpu as pltpu

_LANE = 128
_SUBLANE = 8


def _round_up(x, m):
    return (x + m - 1) // m * m


def _cdiv(a, b):
    return (a + b - 1) // b


def _routing_kernel(x_ref, w1_ref, b1_ref, w2t_ref, b2t_ref, ot_ref):
    # x_ref:   (TILE_B, D)          streamed per grid step
    # w1_ref:  (D, H)               VMEM-resident (index_map -> (0, 0))
    # b1_ref:  (1, H)      f32      resident
    # w2t_ref: (OUT_P, H)           resident; rows >= E+1 are zero padding
    # b2t_ref: (OUT_P, 1)  f32      resident; rows >= E+1 are zero padding
    # ot_ref:  (OUT_P, TILE_B)      streamed; transposed, lane-dense output
    x = x_ref[...].astype(w1_ref.dtype)
    h = jnp.dot(x, w1_ref[...], preferred_element_type=jnp.float32) + b1_ref[...]
    h = jnp.maximum(h, 0.0)                           # ReLU (f32)
    # Second matmul computed directly in transposed form:
    #   out_t[j, b] = sum_k w2t[j, k] * h[b, k]
    # "NT" dot_general (same dimension_numbers as the q @ k^T pattern in the TPU
    # flash-attention kernel) -> no explicit transpose, result is lane-dense in batch.
    out_t = jax.lax.dot_general(
        w2t_ref[...], h.astype(w2t_ref.dtype),
        dimension_numbers=(((1,), (1,)), ((), ())),
        preferred_element_type=jnp.float32,
    ) + b2t_ref[...]
    ot_ref[...] = out_t.astype(ot_ref.dtype)


def prepare_routing_params(w1, b1, w2, b2, *, param_dtype=None):
    """Convert logical params to kernel layout ONCE (not per forward call).

    Inputs ((in, out) layout): w1 (D, H), b1 (H,), w2 (H, E+1), b2 (E+1,).
    Returns: w1 (D, H), b1 (1, H) f32, w2t (round_up(E+1, 8), H),
             b2t (round_up(E+1, 8), 1) f32.
    Biases stay f32 (added post-accumulation); set param_dtype=jnp.bfloat16 to
    store the matmul weights in bf16 (f32 accumulation is kept in the kernel).
    """
    d, h = w1.shape
    out_dim = w2.shape[1]
    out_p = _round_up(out_dim, _SUBLANE)
    b1_k = jnp.asarray(b1, jnp.float32).reshape(1, h)
    w2t = jnp.zeros((out_p, h), w2.dtype).at[:out_dim, :].set(w2.T)
    b2t = jnp.zeros((out_p, 1), jnp.float32).at[:out_dim, 0].set(
        jnp.asarray(b2, jnp.float32).reshape(-1))
    w1_k = w1
    if param_dtype is not None:
        w1_k = w1_k.astype(param_dtype)
        w2t = w2t.astype(param_dtype)
    return w1_k, b1_k, w2t, b2t


def routing_controller_forward(x, w1, b1, w2t, b2t, out_dim, *, tile_b=2048):
    """Fused relu(x @ W1 + b1) @ W2 + b2 -> (batch, out_dim).

    Weights must already be in kernel layout (prepare_routing_params).
    """
    batch, shared_dim = x.shape
    hidden_dim = w1.shape[1]
    out_p = w2t.shape[0]
    out_dtype = x.dtype
    x_item = jnp.dtype(x.dtype).itemsize
    o_item = jnp.dtype(out_dtype).itemsize

    # Batch tiling: big, lane-aligned tiles amortize per-step pipeline overhead;
    # cap so the grid keeps >= 2 steps when possible (v7x dual TensorCore).
    cap = _round_up(_cdiv(batch, 2), _LANE)
    tile_b = _round_up(max(min(tile_b, cap), _LANE), _LANE)
    grid = (_cdiv(batch, tile_b),)          # partial last block handled by Pallas

    # VMEM budget: double-buffered x / out tiles + (double-buffered) resident weights.
    w_bytes = (w1.size * jnp.dtype(w1.dtype).itemsize
               + b1.size * jnp.dtype(b1.dtype).itemsize
               + w2t.size * jnp.dtype(w2t.dtype).itemsize
               + b2t.size * jnp.dtype(b2t.dtype).itemsize)
    vmem_bytes = 2 * (tile_b * shared_dim * x_item + tile_b * out_p * o_item) + 2 * w_bytes
    vmem_limit = int(min(max(2 * vmem_bytes, 2 << 20), 64 << 20))

    cost = pl.CostEstimate(
        flops=2 * batch * shared_dim * hidden_dim + 2 * batch * hidden_dim * out_p,
        transcendentals=0,
        bytes_accessed=batch * shared_dim * x_item + batch * out_p * o_item + w_bytes,
    )

    out_t = pl.pallas_call(
        _routing_kernel,
        out_shape=jax.ShapeDtypeStruct((out_p, batch), out_dtype),
        grid=grid,
        in_specs=[
            pl.BlockSpec((tile_b, shared_dim), lambda i: (i, 0)),     # x: streamed
            pl.BlockSpec((shared_dim, hidden_dim), lambda i: (0, 0)),  # w1: resident
            pl.BlockSpec((1, hidden_dim), lambda i: (0, 0)),           # b1: resident
            pl.BlockSpec((out_p, hidden_dim), lambda i: (0, 0)),       # w2t: resident
            pl.BlockSpec((out_p, 1), lambda i: (0, 0)),                # b2t: resident
        ],
        out_specs=pl.BlockSpec((out_p, tile_b), lambda i: (0, i)),
        compiler_params=pltpu.CompilerParams(
            dimension_semantics=("parallel",),
            vmem_limit_bytes=vmem_limit,
        ),
        cost_estimate=cost,
    )(x, w1, b1, w2t, b2t)

    # (OUT_P, batch) -> (batch, out_dim). Touches only out_dim*batch elements,
    # tiny vs the kernel's streams (and contiguous, unlike the old 20-of-512B slice).
    return out_t[:out_dim, :].T


def init_routing_controller_params(key, shared_dim, num_experts,
                                    hidden_dim_multiplier=1, dtype=jnp.float32):
    """torch.nn.Linear-style init (uniform +/- 1/sqrt(fan_in)), logical layout."""
    hidden_dim = shared_dim * hidden_dim_multiplier
    out_dim = num_experts + 1
    k1, k2, k3, k4 = jax.random.split(key, 4)
    bound1 = 1.0 / (shared_dim ** 0.5)
    w1 = jax.random.uniform(k1, (shared_dim, hidden_dim), dtype, -bound1, bound1)
    b1 = jax.random.uniform(k2, (hidden_dim,), dtype, -bound1, bound1)
    bound2 = 1.0 / (hidden_dim ** 0.5)
    w2 = jax.random.uniform(k3, (hidden_dim, out_dim), dtype, -bound2, bound2)
    b2 = jax.random.uniform(k4, (out_dim,), dtype, -bound2, bound2)
    return w1, b1, w2, b2


if __name__ == "__main__":
    # Module-consistent small shapes: shared_dim=32, num_experts=4 (-> out_dim=5).
    shared_dim, num_experts, mult = 32, 4, 1
    out_dim = num_experts + 1

    key = jax.random.PRNGKey(0)
    kx, kp, kx2 = jax.random.split(key, 3)

    w1, b1, w2, b2 = init_routing_controller_params(kp, shared_dim, num_experts, mult)
    kw1, kb1, kw2t, kb2t = prepare_routing_params(w1, b1, w2, b2)

    def reference(xx):
        return jnp.maximum(xx @ w1 + b1[None, :], 0.0) @ w2 + b2[None, :]

    # Small batch: single grid step, partial blocks everywhere.
    batch = 8
    x = jax.random.normal(kx, (batch, shared_dim), dtype=jnp.float32)
    out = jax.block_until_ready(
        routing_controller_forward(x, kw1, kb1, kw2t, kb2t, out_dim))
    assert out.shape == (batch, out_dim)
    assert jnp.allclose(out, reference(x), atol=1e-5, rtol=1e-5)

    # Larger batch: exercises the batch grid (>= 2 steps) and the transposed,
    # lane-dense output path.
    big = 1024
    x_big = jax.random.normal(kx2, (big, shared_dim), dtype=jnp.float32)
    out_big = jax.block_until_ready(
        routing_controller_forward(x_big, kw1, kb1, kw2t, kb2t, out_dim, tile_b=2048))
    assert out_big.shape == (big, out_dim)
    assert jnp.allclose(out_big, reference(x_big), atol=1e-5, rtol=1e-5)

    # bfloat16 path (halves the x read stream when the caller feeds bf16 x);
    # accumulation stays f32, so only bf16 quantization error vs the f32 reference.
    bw1, bb1, bw2t, bb2t = prepare_routing_params(w1, b1, w2, b2,
                                                  param_dtype=jnp.bfloat16)
    out_bf16 = jax.block_until_ready(
        routing_controller_forward(x_big.astype(jnp.bfloat16),
                                   bw1, bb1, bw2t, bb2t, out_dim))
    assert out_bf16.shape == (big, out_dim)
    assert jnp.allclose(out_bf16.astype(jnp.float32), reference(x_big),
                        atol=0.1, rtol=0.1)

    print("KERNEL_OK")
</pallas_src>

<mosaic_0001>
module attributes {stable_mosaic.version = 11 : i64} {
  func.func @_routing_kernel(%arg0: i32, %arg1: memref<128x32xf32, #tpu.memory_space<vmem>>, %arg2: memref<32x32xf32, #tpu.memory_space<vmem>>, %arg3: memref<1x32xf32, #tpu.memory_space<vmem>>, %arg4: memref<8x32xf32, #tpu.memory_space<vmem>>, %arg5: memref<8x1xf32, #tpu.memory_space<vmem>>, %arg6: memref<8x128xf32, #tpu.memory_space<vmem>>) attributes {dimension_semantics = [#tpu.dimension_semantics<parallel>], iteration_bounds = array<i64: 1>, scalar_prefetch = 0 : i64, scratch_operands = 0 : i64, tpu.core_type = #tpu.core_type<tc>, window_params = [{transform_indices = @transform_0, window_bounds = array<i64: 128, 32>}, {pipeline_mode = #tpu.pipeline_mode<synchronous>, transform_indices = @transform_1, window_bounds = array<i64: 32, 32>}, {pipeline_mode = #tpu.pipeline_mode<synchronous>, transform_indices = @transform_2, window_bounds = array<i64: 1, 32>}, {pipeline_mode = #tpu.pipeline_mode<synchronous>, transform_indices = @transform_3, window_bounds = array<i64: 8, 32>}, {pipeline_mode = #tpu.pipeline_mode<synchronous>, transform_indices = @transform_4, window_bounds = array<i64: 8, 1>}, {transform_indices = @transform_5, window_bounds = array<i64: 8, 128>}]} {
    %c0 = arith.constant 0 : index
    %c0_0 = arith.constant 0 : index
    %0 = vector.load %arg1[%c0, %c0_0] : memref<128x32xf32, #tpu.memory_space<vmem>>, vector<128x32xf32>
    %c0_1 = arith.constant 0 : index
    %c0_2 = arith.constant 0 : index
    %1 = vector.load %arg2[%c0_1, %c0_2] : memref<32x32xf32, #tpu.memory_space<vmem>>, vector<32x32xf32>
    %cst = arith.constant dense<0.000000e+00> : vector<128x32xf32>
    %2 = tpu.matmul %0, %1, %cst {dimension_numbers = #tpu.dot_dimension_numbers<[1], [0], [0], [1], [0, 0, 1, 1], [], []>} : vector<128x32xf32>, vector<32x32xf32>, vector<128x32xf32> -> vector<128x32xf32>
    %c0_3 = arith.constant 0 : index
    %c0_4 = arith.constant 0 : index
    %3 = vector.load %arg3[%c0_3, %c0_4] : memref<1x32xf32, #tpu.memory_space<vmem>>, vector<1x32xf32>
    %4 = vector.broadcast %3 : vector<1x32xf32> to vector<128x32xf32>
    %5 = arith.addf %2, %4 : vector<128x32xf32>
    %cst_5 = arith.constant 0.000000e+00 : f32
    %6 = vector.broadcast %cst_5 : f32 to vector<128x32xf32>
    %7 = arith.maximumf %5, %6 : vector<128x32xf32>
    %c0_6 = arith.constant 0 : index
    %c0_7 = arith.constant 0 : index
    %8 = vector.load %arg4[%c0_6, %c0_7] : memref<8x32xf32, #tpu.memory_space<vmem>>, vector<8x32xf32>
    %cst_8 = arith.constant dense<0.000000e+00> : vector<8x128xf32>
    %9 = tpu.matmul %8, %7, %cst_8 {dimension_numbers = #tpu.dot_dimension_numbers<[1], [1], [0], [0], [0, 0, 1, 0], [], []>} : vector<8x32xf32>, vector<128x32xf32>, vector<8x128xf32> -> vector<8x128xf32>
    %c0_9 = arith.constant 0 : index
    %c0_10 = arith.constant 0 : index
    %10 = vector.load %arg5[%c0_9, %c0_10] : memref<8x1xf32, #tpu.memory_space<vmem>>, vector<8x1xf32>
    %11 = vector.broadcast %10 : vector<8x1xf32> to vector<8x128xf32>
    %12 = arith.addf %9, %11 : vector<8x128xf32>
    %c0_11 = arith.constant 0 : index
    %c0_12 = arith.constant 0 : index
    %13 = vector.load %arg6[%c0_11, %c0_12] : memref<8x128xf32, #tpu.memory_space<vmem>>, vector<8x128xf32>
    tpu.vector_store %arg6[%c0_11, %c0_12], %12 {strides = array<i32>} : memref<8x128xf32, #tpu.memory_space<vmem>>, vector<8x128xf32>,
    return
  }
  func.func @transform_0(%arg0: i32) -> (i32, i32) {
    %c0_i32 = arith.constant 0 : i32
    %c0_i32_0 = arith.constant 0 : i32
    return %arg0, %c0_i32 : i32, i32
  }
  func.func @transform_1(%arg0: i32) -> (i32, i32) {
    %c0_i32 = arith.constant 0 : i32
    %c0_i32_0 = arith.constant 0 : i32
    %c0_i32_1 = arith.constant 0 : i32
    return %c0_i32, %c0_i32_0 : i32, i32
  }
  func.func @transform_2(%arg0: i32) -> (i32, i32) {
    %c0_i32 = arith.constant 0 : i32
    %c0_i32_0 = arith.constant 0 : i32
    %c0_i32_1 = arith.constant 0 : i32
    return %c0_i32, %c0_i32_0 : i32, i32
  }
  func.func @transform_3(%arg0: i32) -> (i32, i32) {
    %c0_i32 = arith.constant 0 : i32
    %c0_i32_0 = arith.constant 0 : i32
    %c0_i32_1 = arith.constant 0 : i32
    return %c0_i32, %c0_i32_0 : i32, i32
  }
  func.func @transform_4(%arg0: i32) -> (i32, i32) {
    %c0_i32 = arith.constant 0 : i32
    %c0_i32_0 = arith.constant 0 : i32
    %c0_i32_1 = arith.constant 0 : i32
    return %c0_i32, %c0_i32_0 : i32, i32
  }
  func.func @transform_5(%arg0: i32) -> (i32, i32) {
    %c0_i32 = arith.constant 0 : i32
    %c0_i32_0 = arith.constant 0 : i32
    return %c0_i32, %arg0 : i32, i32
  }
}

</mosaic_0001>

<llo_original>
// kernel: tpu_custom_call.1
$region0: #{tpu_custom_call.1}
  #allocation0 [shape = 'u32[]', space=smem, size = 0x4, offset = 0x4, fixed_abs, tag = 'smem constant byte address 0x4 - core index']
  #allocation1 [shape = 'u32[144,128]{1,0:T(1,128)}', space=vmem, size = 0x12000, scoped, tag = 'internal scratch']
  %s0 = inlined_call_operand.vmem [shape: f32[8,32], index: 0, kind: input, shape index: {}]
  %s1 = inlined_call_operand.hbm [shape: f32[32,32], index: 1, kind: input, shape index: {}]
  %s2 = inlined_call_operand.hbm [shape: f32[1,32], index: 2, kind: input, shape index: {}]
  %s3 = inlined_call_operand.vmem [shape: f32[8,32], index: 3, kind: input, shape index: {}]
  %s4 = inlined_call_operand.vmem [shape: f32[8,1], index: 4, kind: input, shape index: {}]
  %s5 = inlined_call_operand.hbm [shape: f32[8,8], index: 5, kind: output, shape index: {}]
  %s6 = sld [smem:[#allocation0]]
  $region38: #{tpu_custom_call.1} parent=0
    _
  %s8 = ssub.s32 1, %s6
  %s9 = scalar_select 0, %s8, %s6
  $region1: #{tpu_custom_call.1} parent=0
    #allocation2 [shape = 'u8[16384]{0}', space=vmem, size = 0x4000, scoped, tag = 'input window, operand 1, single buffered']
    #allocation3 [shape = 's32[1]{0}', space=sflag, size = 0x4, scoped, tag = 'scoped memory for tpu_custom_call.1']
    #allocation4 [shape = 's32[1]{0}', space=sflag, size = 0x4, scoped, tag = 'scoped memory for tpu_custom_call.1']
    #allocation5 [shape = 'u8[512]{0}', space=vmem, size = 0x400, scoped, tag = 'input window, operand 2, single buffered']
    #allocation6 [shape = 's32[1]{0}', space=sflag, size = 0x4, scoped, tag = 'scoped memory for tpu_custom_call.1']
    #allocation7 [shape = 'u8[4096]{0}', space=vmem, size = 0x1000, scoped, tag = 'output window, operand 0, single buffered']
    %10 = vsyncpa [#allocation3], 0
    %11 = vsyncpa [#allocation6], 0
    %12 = vsyncpa [#allocation4], 0
    // Predicated region
    $region2: #{tpu_custom_call.1} parent=1 // pred_check
      _
    $region3: #{tpu_custom_call.1} parent=1 // pred_check_branch
      %14 = sbr.rel (0) target = $region5
    $region4: #{tpu_custom_call.1} parent=1 // pred_region
      _
    $region5: #{tpu_custom_call.1} parent=1 // pred_fallthru
      _
    // Predicated region
    $region6: #{tpu_custom_call.1} parent=1 // pred_check
      _
    $region7: #{tpu_custom_call.1} parent=1 // pred_check_branch
      %16 = sbr.rel (0) target = $region9
    $region8: #{tpu_custom_call.1} parent=1 // pred_region
      %s18 = ssub.s32 512, 512
      %19 = vsyncadd [#allocation3], %s18
      %s20 = sshll.u32 [#allocation2], 4
      %s21 = int_to_ptr.vmem [resolvable:$true] %s20
      %26 = dma.hbm_to_vmem [thread:$0]  %s1, 512, %s21, [#allocation3], 128, 128, 8
    $region9: #{tpu_custom_call.1} parent=1 // pred_fallthru
      _
    // Predicated region
    $region10: #{tpu_custom_call.1} parent=1 // pred_check
      _
    $region11: #{tpu_custom_call.1} parent=1 // pred_check_branch
      %28 = sbr.rel (0) target = $region13
    $region12: #{tpu_custom_call.1} parent=1 // pred_region
      %s30 = ssub.s32 16, 16
      %31 = vsyncadd [#allocation6], %s30
      %s33 = sshll.u32 [#allocation5], 4
      %s34 = int_to_ptr.vmem [resolvable:$true] %s33
      %36 = dma.hbm_to_vmem [thread:$0]  %s2, 16, %s34, [#allocation6]
    $region13: #{tpu_custom_call.1} parent=1 // pred_fallthru
      _
    // Predicated region
    $region14: #{tpu_custom_call.1} parent=1 // pred_check
      _
    $region15: #{tpu_custom_call.1} parent=1 // pred_check_branch
      %38 = sbr.rel (0) target = $region17
    $region16: #{tpu_custom_call.1} parent=1 // pred_region
      _
    $region17: #{tpu_custom_call.1} parent=1 // pred_fallthru
      _
    // Predicated region
    $region18: #{tpu_custom_call.1} parent=1 // pred_check
      _
    $region19: #{tpu_custom_call.1} parent=1 // pred_check_branch
      %40 = sbr.rel (0) target = $region21
    $region20: #{tpu_custom_call.1} parent=1 // pred_region
      _
    $region21: #{tpu_custom_call.1} parent=1 // pred_fallthru
      _
    // Predicated region
    $region22: #{tpu_custom_call.1} parent=1 // pred_check
      _
    $region23: #{tpu_custom_call.1} parent=1 // pred_check_branch
      %42 = sbr.rel (0) target = $region25
    $region24: #{tpu_custom_call.1} parent=1 // pred_region
      %43 = dma.done [#allocation3], 512
    $region25: #{tpu_custom_call.1} parent=1 // pred_fallthru
      _
    // Predicated region
    $region26: #{tpu_custom_call.1} parent=1 // pred_check
      _
    $region27: #{tpu_custom_call.1} parent=1 // pred_check_branch
      %45 = sbr.rel (0) target = $region29
    $region28: #{tpu_custom_call.1} parent=1 // pred_region
      %46 = dma.done [#allocation6], 16
    $region29: #{tpu_custom_call.1} parent=1 // pred_fallthru
      _
    %v47 = vld [vmem:[%s0] sm:$0xff]
    %v48 = vld [vmem:[%s0 + $0x8] sm:$0xff]
    %v49 = vld [vmem:[%s0 + $0x10] sm:$0xff]
    %v50 = vld [vmem:[%s0 + $0x18] sm:$0xff]
    %v51 = vld [vmem:[%s0 + $0x20] sm:$0xff]
    %v52 = vld [vmem:[%s0 + $0x28] sm:$0xff]
    %v53 = vld [vmem:[%s0 + $0x30] sm:$0xff]
    %v54 = vld [vmem:[%s0 + $0x38] sm:$0xff]
    %v55 = vld [vmem:[%s0 + $0x40] sm:$0xff]
    %v56 = vld [vmem:[%s0 + $0x48] sm:$0xff]
    %v57 = vld [vmem:[%s0 + $0x50] sm:$0xff]
    %v58 = vld [vmem:[%s0 + $0x58] sm:$0xff]
    %v59 = vld [vmem:[%s0 + $0x60] sm:$0xff]
    %v60 = vld [vmem:[%s0 + $0x68] sm:$0xff]
    %v61 = vld [vmem:[%s0 + $0x70] sm:$0xff]
    %v62 = vld [vmem:[%s0 + $0x78] sm:$0xff]
    %v63 = vld [vmem:[#allocation2] sm:$0xff]
    %v64 = vld [vmem:[#allocation2 + $0x8] sm:$0xff]
    %v65 = vld [vmem:[#allocation2 + $0x10] sm:$0xff]
    %v66 = vld [vmem:[#allocation2 + $0x18] sm:$0xff]
    %v67 = vld [vmem:[#allocation5] sm:$0x1]
    %v69 = vlaneseq
    %v70 = vshrl.u32 %v69, 7
    %v71 = vsub.s32 0, %v70
    %v72 = vrot.slane %v67, %v71
    %vm74 = vcmask 261120
    %v76 = vsel %vm74, %v47, 0
    %v79 = vsel %vm74, %v48, 0
    %v82 = vsel %vm74, %v49, 0
    %v85 = vsel %vm74, %v50, 0
    %v88 = vsel %vm74, %v51, 0
    %v91 = vsel %vm74, %v52, 0
    %v94 = vsel %vm74, %v53, 0
    %v97 = vsel %vm74, %v54, 0
    %v100 = vsel %vm74, %v55, 0
    %v103 = vsel %vm74, %v56, 0
    %v106 = vsel %vm74, %v57, 0
    %v109 = vsel %vm74, %v58, 0
    %v112 = vsel %vm74, %v59, 0
    %v115 = vsel %vm74, %v60, 0
    %v118 = vsel %vm74, %v61, 0
    %v121 = vsel %vm74, %v62, 0
    %123 = vmatprep.subr.mxu0 0.0
    %124 = vmatpush1.msra.mxu0 %v63
    %125 = vmatprep.subr.mxu0 0.0
    %126 = vmatpush1.msra.mxu0 %v64
    %127 = vmatprep.subr.mxu0 0.0
    %128 = vmatpush1.msra.mxu0 %v65
    %129 = vmatprep.subr.mxu0 0.0
    %130 = vmatpush1.msra.mxu0 %v66
    %131 = vmatprep.subr.mxu0 0.0
    %132 = vmatpush1.msra.mxu0 0.0
    %133 = vmatprep.subr.mxu0 0.0
    %134 = vmatpush1.msra.mxu0 0.0
    %135 = vmatprep.subr.mxu0 0.0
    %136 = vmatpush1.msra.mxu0 0.0
    %137 = vmatprep.subr.mxu0 0.0
    %138 = vmatpush1.msra.mxu0 0.0
    %139 = vmatprep.subr.mxu0 0.0
    %140 = vmatpush1.msra.mxu0 0.0
    %141 = vmatprep.subr.mxu0 0.0
    %142 = vmatpush1.msra.mxu0 0.0
    %143 = vmatprep.subr.mxu0 0.0
    %144 = vmatpush1.msra.mxu0 0.0
    %145 = vmatprep.subr.mxu0 0.0
    %146 = vmatpush1.msra.mxu0 0.0
    %147 = vmatprep.subr.mxu0 0.0
    %148 = vmatpush1.msra.mxu0 0.0
    %149 = vmatprep.subr.mxu0 0.0
    %150 = vmatpush1.msra.mxu0 0.0
    %151 = vmatprep.subr.mxu0 0.0
    %152 = vmatpush1.msra.mxu0 0.0
    %153 = vmatprep.subr.mxu0 0.0
    %154 = vmatpush1.msra.mxu0 0.0
    %155 = vmatprep.subr.mxu0 0.0
    %156 = vmatpush1.msra.mxu0 0.0
    %157 = vmatprep.subr.mxu0 0.0
    %158 = vmatpush1.msra.mxu0 0.0
    %159 = vmatprep.subr.mxu0 0.0
    %160 = vmatpush1.msra.mxu0 0.0
    %161 = vmatprep.subr.mxu0 0.0
    %162 = vmatpush1.msra.mxu0 0.0
    %163 = vmatprep.subr.mxu0 0.0
    %164 = vmatpush1.msra.mxu0 0.0
    %165 = vmatprep.subr.mxu0 0.0
    %166 = vmatpush1.msra.mxu0 0.0
    %167 = vmatprep.subr.mxu0 0.0
    %168 = vmatpush1.msra.mxu0 0.0
    %169 = vmatprep.subr.mxu0 0.0
    %170 = vmatpush1.msra.mxu0 0.0
    %171 = vmatprep.subr.mxu0 0.0
    %172 = vmatpush1.msra.mxu0 0.0
    %173 = vmatprep.subr.mxu0 0.0
    %174 = vmatpush1.msra.mxu0 0.0
    %175 = vmatprep.subr.mxu0 0.0
    %176 = vmatpush1.msra.mxu0 0.0
    %177 = vmatprep.subr.mxu0 0.0
    %178 = vmatpush1.msra.mxu0 0.0
    %179 = vmatprep.subr.mxu0 0.0
    %180 = vmatpush1.msra.mxu0 0.0
    %181 = vmatprep.subr.mxu0 0.0
    %182 = vmatpush1.msra.mxu0 0.0
    %183 = vmatprep.subr.mxu0 0.0
    %184 = vmatpush1.msra.mxu0 0.0
    %185 = vmatprep.subr.mxu0 0.0
    %186 = vmatpush1.msra.mxu0 0.0
    %187 = vmatprep.mubr.f32.mxu0 0.0
    %188 = vmatmul.mubr.f32.gmra.mrb[0].mxu0 %v76
    %v189 = vpop.f32.mrb[0].mxu0
    %v190 = vadd.f32 %v72, %v189
    %v191 = vpop.f32.mrb[0].mxu0
    %192 = vmatprep.mubr.f32.mxu0 0.0
    %193 = vmatmul.mubr.f32.gmra.mrb[0].mxu0 %v79
    %v194 = vpop.f32.mrb[0].mxu0
    %v195 = vadd.f32 %v72, %v194
    %v196 = vpop.f32.mrb[0].mxu0
    %197 = vmatprep.mubr.f32.mxu0 0.0
    %198 = vmatmul.mubr.f32.gmra.mrb[0].mxu0 %v82
    %v199 = vpop.f32.mrb[0].mxu0
    %v200 = vadd.f32 %v72, %v199
    %v201 = vpop.f32.mrb[0].mxu0
    %202 = vmatprep.mubr.f32.mxu0 0.0
    %203 = vmatmul.mubr.f32.gmra.mrb[0].mxu0 %v85
    %v204 = vpop.f32.mrb[0].mxu0
    %v205 = vadd.f32 %v72, %v204
    %v206 = vpop.f32.mrb[0].mxu0
    %207 = vmatprep.mubr.f32.mxu0 0.0
    %208 = vmatmul.mubr.f32.gmra.mrb[0].mxu0 %v88
    %v209 = vpop.f32.mrb[0].mxu0
    %v210 = vadd.f32 %v72, %v209
    %v211 = vpop.f32.mrb[0].mxu0
    %212 = vmatprep.mubr.f32.mxu0 0.0
    %213 = vmatmul.mubr.f32.gmra.mrb[0].mxu0 %v91
    %v214 = vpop.f32.mrb[0].mxu0
    %v215 = vadd.f32 %v72, %v214
    %v216 = vpop.f32.mrb[0].mxu0
    %217 = vmatprep.mubr.f32.mxu0 0.0
    %218 = vmatmul.mubr.f32.gmra.mrb[0].mxu0 %v94
    %v219 = vpop.f32.mrb[0].mxu0
    %v220 = vadd.f32 %v72, %v219
    %v221 = vpop.f32.mrb[0].mxu0
    %222 = vmatprep.mubr.f32.mxu0 0.0
    %223 = vmatmul.mubr.f32.gmra.mrb[0].mxu0 %v97
    %v224 = vpop.f32.mrb[0].mxu0
    %v225 = vadd.f32 %v72, %v224
    %v226 = vpop.f32.mrb[0].mxu0
    %227 = vmatprep.mubr.f32.mxu0 0.0
    %228 = vmatmul.mubr.f32.gmra.mrb[0].mxu0 %v100
    %v229 = vpop.f32.mrb[0].mxu0
    %v230 = vadd.f32 %v72, %v229
    %v231 = vpop.f32.mrb[0].mxu0
    %232 = vmatprep.mubr.f32.mxu0 0.0
    %233 = vmatmul.mubr.f32.gmra.mrb[0].mxu0 %v103
    %v234 = vpop.f32.mrb[0].mxu0
    %v235 = vadd.f32 %v72, %v234
    %v236 = vpop.f32.mrb[0].mxu0
    %237 = vmatprep.mubr.f32.mxu0 0.0
    %238 = vmatmul.mubr.f32.gmra.mrb[0].mxu0 %v106
    %v239 = vpop.f32.mrb[0].mxu0
    %v240 = vadd.f32 %v72, %v239
    %v241 = vpop.f32.mrb[0].mxu0
    %242 = vmatprep.mubr.f32.mxu0 0.0
    %243 = vmatmul.mubr.f32.gmra.mrb[0].mxu0 %v109
    %v244 = vpop.f32.mrb[0].mxu0
    %v245 = vadd.f32 %v72, %v244
    %v246 = vpop.f32.mrb[0].mxu0
    %247 = vmatprep.mubr.f32.mxu0 0.0
    %248 = vmatmul.mubr.f32.gmra.mrb[0].mxu0 %v112
    %v249 = vpop.f32.mrb[0].mxu0
    %v250 = vadd.f32 %v72, %v249
    %v251 = vpop.f32.mrb[0].mxu0
    %252 = vmatprep.mubr.f32.mxu0 0.0
    %253 = vmatmul.mubr.f32.gmra.mrb[0].mxu0 %v115
    %v254 = vpop.f32.mrb[0].mxu0
    %v255 = vadd.f32 %v72, %v254
    %v256 = vpop.f32.mrb[0].mxu0
    %257 = vmatprep.mubr.f32.mxu0 0.0
    %258 = vmatmul.mubr.f32.gmra.mrb[0].mxu0 %v118
    %v259 = vpop.f32.mrb[0].mxu0
    %v260 = vadd.f32 %v72, %v259
    %v261 = vpop.f32.mrb[0].mxu0
    %262 = vmatprep.mubr.f32.mxu0 0.0
    %263 = vmatmul.mubr.f32.gmra.mrb[0].mxu0 %v121
    %v264 = vpop.f32.mrb[0].mxu0
    %v265 = vadd.f32 %v72, %v264
    %v266 = vpop.f32.mrb[0].mxu0
    %267 = vdwg.mxu0
    %v268 = vmax.f32 %v190, 0.0
    %v269 = vmax.f32 %v195, 0.0
    %v270 = vmax.f32 %v200, 0.0
    %v271 = vmax.f32 %v205, 0.0
    %v272 = vmax.f32 %v210, 0.0
    %v273 = vmax.f32 %v215, 0.0
    %v274 = vmax.f32 %v220, 0.0
    %v275 = vmax.f32 %v225, 0.0
    %v276 = vmax.f32 %v230, 0.0
    %v277 = vmax.f32 %v235, 0.0
    %v278 = vmax.f32 %v240, 0.0
    %v279 = vmax.f32 %v245, 0.0
    %v280 = vmax.f32 %v250, 0.0
    %v281 = vmax.f32 %v255, 0.0
    %v282 = vmax.f32 %v260, 0.0
    %v283 = vmax.f32 %v265, 0.0
    %v284 = vld [vmem:[%s3] sm:$0xff]
    %v285 = vld [vmem:[%s4] sm:$0xff]
    %287 = vset.pattern.permute.xlu0 0
    %288 = vperm.xlu0 %287, %v285
    %v289 = vpop.permute.xlu0 %288
    %v292 = vsel %vm74, %v284, 0
    %v295 = vsel %vm74, %v268, 0
    %v298 = vsel %vm74, %v269, 0
    %v301 = vsel %vm74, %v270, 0
    %v304 = vsel %vm74, %v271, 0
    %v307 = vsel %vm74, %v272, 0
    %v310 = vsel %vm74, %v273, 0
    %v313 = vsel %vm74, %v274, 0
    %v316 = vsel %vm74, %v275, 0
    %v319 = vsel %vm74, %v276, 0
    %v322 = vsel %vm74, %v277, 0
    %v325 = vsel %vm74, %v278, 0
    %v328 = vsel %vm74, %v279, 0
    %v331 = vsel %vm74, %v280, 0
    %v334 = vsel %vm74, %v281, 0
    %v337 = vsel %vm74, %v282, 0
    %v340 = vsel %vm74, %v283, 0
    %342 = vmatprep.subr.mxu0 0.0
    %343 = vmatpush1.xpose.msra.mxu0 %v295
    %344 = vmatprep.subr.mxu0 0.0
    %345 = vmatpush1.xpose.msra.mxu0 %v298
    %346 = vmatprep.subr.mxu0 0.0
    %347 = vmatpush1.xpose.msra.mxu0 %v301
    %348 = vmatprep.subr.mxu0 0.0
    %349 = vmatpush1.xpose.msra.mxu0 %v304
    %350 = vmatprep.subr.mxu0 0.0
    %351 = vmatpush1.xpose.msra.mxu0 %v307
    %352 = vmatprep.subr.mxu0 0.0
    %353 = vmatpush1.xpose.msra.mxu0 %v310
    %354 = vmatprep.subr.mxu0 0.0
    %355 = vmatpush1.xpose.msra.mxu0 %v313
    %356 = vmatprep.subr.mxu0 0.0
    %357 = vmatpush1.xpose.msra.mxu0 %v316
    %358 = vmatprep.subr.mxu0 0.0
    %359 = vmatpush1.xpose.msra.mxu0 %v319
    %360 = vmatprep.subr.mxu0 0.0
    %361 = vmatpush1.xpose.msra.mxu0 %v322
    %362 = vmatprep.subr.mxu0 0.0
    %363 = vmatpush1.xpose.msra.mxu0 %v325
    %364 = vmatprep.subr.mxu0 0.0
    %365 = vmatpush1.xpose.msra.mxu0 %v328
    %366 = vmatprep.subr.mxu0 0.0
    %367 = vmatpush1.xpose.msra.mxu0 %v331
    %368 = vmatprep.subr.mxu0 0.0
    %369 = vmatpush1.xpose.msra.mxu0 %v334
    %370 = vmatprep.subr.mxu0 0.0
    %371 = vmatpush1.xpose.msra.mxu0 %v337
    %372 = vmatprep.subr.mxu0 0.0
    %373 = vmatpush1.xpose.msra.mxu0 %v340
    %374 = vmatprep.subr.mxu0 0.0
    %375 = vmatpush1.xpose.msra.mxu0 0.0
    %376 = vmatprep.subr.mxu0 0.0
    %377 = vmatpush1.xpose.msra.mxu0 0.0
    %378 = vmatprep.subr.mxu0 0.0
    %379 = vmatpush1.xpose.msra.mxu0 0.0
    %380 = vmatprep.subr.mxu0 0.0
    %381 = vmatpush1.xpose.msra.mxu0 0.0
    %382 = vmatprep.subr.mxu0 0.0
    %383 = vmatpush1.xpose.msra.mxu0 0.0
    %384 = vmatprep.subr.mxu0 0.0
    %385 = vmatpush1.xpose.msra.mxu0 0.0
    %386 = vmatprep.subr.mxu0 0.0
    %387 = vmatpush1.xpose.msra.mxu0 0.0
    %388 = vmatprep.subr.mxu0 0.0
    %389 = vmatpush1.xpose.msra.mxu0 0.0
    %390 = vmatprep.subr.mxu0 0.0
    %391 = vmatpush1.xpose.msra.mxu0 0.0
    %392 = vmatprep.subr.mxu0 0.0
    %393 = vmatpush1.xpose.msra.mxu0 0.0
    %394 = vmatprep.subr.mxu0 0.0
    %395 = vmatpush1.xpose.msra.mxu0 0.0
    %396 = vmatprep.subr.mxu0 0.0
    %397 = vmatpush1.xpose.msra.mxu0 0.0
    %398 = vmatprep.subr.mxu0 0.0
    %399 = vmatpush1.xpose.msra.mxu0 0.0
    %400 = vmatprep.subr.mxu0 0.0
    %401 = vmatpush1.xpose.msra.mxu0 0.0
    %402 = vmatprep.subr.mxu0 0.0
    %403 = vmatpush1.xpose.msra.mxu0 0.0
    %404 = vmatprep.subr.mxu0 0.0
    %405 = vmatpush1.xpose.msra.mxu0 0.0
    %406 = vmatprep.mubr.f32.mxu0 0.0
    %407 = vmatmul.mubr.f32.gmra.mrb[0].mxu0 %v292
    %v408 = vpop.f32.mrb[0].mxu0
    %v409 = vadd.f32 %v289, %v408
    %v410 = vpop.f32.mrb[0].mxu0
    %411 = vdwg.mxu0
    %412 = vst [vmem:[#allocation7] sm:$0xff] %v409
    // Predicated region
    $region30: #{tpu_custom_call.1} parent=1 // pred_check
      _
    $region31: #{tpu_custom_call.1} parent=1 // pred_check_branch
      %414 = sbr.rel (0) target = $region33
    $region32: #{tpu_custom_call.1} parent=1 // pred_region
      %s416 = ssub.s32 128, 128
      %417 = vsyncadd [#allocation4], %s416
      %s419 = sshll.u32 [#allocation7], 4
      %s420 = int_to_ptr.vmem [resolvable:$true] %s419
      %422 = dma.vmem_to_hbm [thread:$0]  %s420, 128, %s5, [#allocation4]
    $region33: #{tpu_custom_call.1} parent=1 // pred_fallthru
      _
    // Predicated region
    $region34: #{tpu_custom_call.1} parent=1 // pred_check
      _
    $region35: #{tpu_custom_call.1} parent=1 // pred_check_branch
      %424 = sbr.rel (0) target = $region37
    $region36: #{tpu_custom_call.1} parent=1 // pred_region
      %425 = dma.done [#allocation4], 128
    $region37: #{tpu_custom_call.1} parent=1 // pred_fallthru
      _
    %426 = vsyncpa [#allocation3], 1
    %427 = vsyncpa [#allocation6], 1
    %428 = vsyncpa [#allocation4], 1

</llo_original>
